<compile_context>
chip_gen: v6e
topology: v6e:2x2x1
jax: 0.10.0
libtpu: 0.0.40
codegen_flags: <defaults>
</compile_context>

<pallas_src>
import jax
import jax.numpy as jnp
from jax.experimental import pallas as pl
from jax.experimental.pallas import tpu as pltpu

HIDDEN = 256


def _round_up(n, m):
    return ((n + m - 1) // m) * m


# --------------------------------------------------------------------------- #
# Kernel
# --------------------------------------------------------------------------- #
def _value_net_kernel(x_ref, w1_ref, b1_ref, w2_ref, b2_ref, w3_ref, b3_ref,
                      o_ref):
    # fc1: f32 on the MXU (K = n_state is tiny -> essentially free), f32 bias+ReLU.
    h1 = jnp.dot(x_ref[...], w1_ref[...], preferred_element_type=jnp.float32)
    h1 = jnp.maximum(h1 + b1_ref[...], 0.0)
    # fc2: bf16 MXU inputs with f32 accumulation; bias + ReLU in f32 on the VPU.
    h2 = jnp.dot(h1.astype(jnp.bfloat16), w2_ref[...],
                 preferred_element_type=jnp.float32)
    h2 = jnp.maximum(h2 + b2_ref[...], 0.0)
    # fc3 (out_features == 1): VPU multiply + cross-lane reduction (XLU) instead
    # of a lane-sparse MXU pass; store lane-dense as a (1, tile_b) row.
    out_row = jnp.sum(h2 * w3_ref[...], axis=-1).reshape(1, -1)   # (1, tile_b)
    o_ref[...] = (out_row + b3_ref[...]).astype(o_ref.dtype)


# --------------------------------------------------------------------------- #
# Wrapper
# --------------------------------------------------------------------------- #
def _choose_tiles(B, tile_b):
    """Pick the batch tile (>=128, lane-dense) and the padded batch size."""
    padded128 = _round_up(B, 128)
    if padded128 <= tile_b:
        tb = padded128                                   # single tile
    else:
        # At least two 256-aligned tiles so v7x can shard across both TCs.
        half = _round_up((padded128 + 1) // 2, 256)
        tb = min(_round_up(tile_b, 256), half)
    padded_b = _round_up(B, tb)
    return tb, padded_b, padded_b // tb


def _vmem_limit_bytes(tb, n_state):
    lane = 128
    n_state_p = _round_up(n_state, lane)
    footprint = (
        2 * tb * n_state_p * 4          # x f32 double buffer (lane-padded)
        + 3 * tb * HIDDEN * 4           # h1 / h2 f32 internals (+ headroom)
        + tb * HIDDEN * 2               # bf16 h1 copy for fc2
        + n_state_p * HIDDEN * 4        # w1 (f32)
        + HIDDEN * HIDDEN * 2           # w2 (bf16)
        + 8 * HIDDEN * 4                # biases / w3 row
        + 2 * 8 * tb * 4                # (1, tb) output double buffer
    )
    return int(min(48 << 20, max(32 << 20, footprint + (8 << 20))))


def value_net_forward(x, prepared_params, *, tile_b=2048):
    """x: [B, n_state] float32 -> [B, 1] float32.

    `prepared_params` must come from prepare_params() (done once, not per call).
    """
    w1, b1, w2_bf, b2, w3_row, b3 = prepared_params
    B, n_state = x.shape

    tb, padded_b, num_tiles = _choose_tiles(B, tile_b)
    x_p = x if padded_b == B else jnp.pad(x, ((0, padded_b - B), (0, 0)))

    # Weights / biases: full-array blocks with constant index_map -> fetched
    # once and VMEM-resident across all grid steps.
    const2 = lambda a: pl.BlockSpec(a.shape, lambda i: (0, 0))

    out = pl.pallas_call(
        _value_net_kernel,
        out_shape=jax.ShapeDtypeStruct((1, padded_b), jnp.float32),
        grid_spec=pltpu.PrefetchScalarGridSpec(
            num_scalar_prefetch=0,
            grid=(num_tiles,),
            in_specs=[
                pl.BlockSpec((tb, n_state), lambda i: (i, 0)),   # x tile (f32)
                const2(w1), const2(b1),
                const2(w2_bf), const2(b2),
                const2(w3_row), const2(b3),
            ],
            # Lane-dense output: batch lives on lanes of a (1, tile_b) row.
            out_specs=pl.BlockSpec((1, tb), lambda i: (0, i)),
        ),
        compiler_params=pltpu.CompilerParams(
            dimension_semantics=("parallel",),
            vmem_limit_bytes=_vmem_limit_bytes(tb, n_state)),
    )(x_p, w1, b1, w2_bf, b2, w3_row, b3)

    return out.reshape(-1)[:B].reshape(B, 1)


# --------------------------------------------------------------------------- #
# Parameters
# --------------------------------------------------------------------------- #
def init_params(key, n_state):
    """Deterministic init mirroring nn.Linear default (uniform +-1/sqrt(fan_in)).
    Weights stored as [in, out] (transposed vs. PyTorch's [out, in])."""
    ks = jax.random.split(key, 6)

    def linear(kw, kb, fan_in, fan_out):
        bound = 1.0 / jnp.sqrt(fan_in)
        w = jax.random.uniform(kw, (fan_in, fan_out), jnp.float32, -bound, bound)
        b = jax.random.uniform(kb, (1, fan_out), jnp.float32, -bound, bound)
        return w, b

    w1, b1 = linear(ks[0], ks[1], n_state, HIDDEN)
    w2, b2 = linear(ks[2], ks[3], HIDDEN, HIDDEN)
    w3, b3 = linear(ks[4], ks[5], HIDDEN, 1)
    return (w1, b1, w2, b2, w3, b3)


def prepare_params(params):
    """One-time conversion to kernel-ready layouts/dtypes (cache the result)."""
    w1, b1, w2, b2, w3, b3 = params
    return (
        w1.astype(jnp.float32),                       # fc1 stays f32
        b1.reshape(1, HIDDEN).astype(jnp.float32),
        w2.astype(jnp.bfloat16),                      # fc2 weights bf16 (MXU)
        b2.reshape(1, HIDDEN).astype(jnp.float32),
        w3.reshape(1, HIDDEN).astype(jnp.float32),    # fc3 as a lane row
        b3.reshape(1, 1).astype(jnp.float32),
    )


# --------------------------------------------------------------------------- #
# References
# --------------------------------------------------------------------------- #
def reference_forward_mixed(x, params):
    """Mirrors kernel precision: f32 fc1, bf16-input/f32-acc fc2, f32 fc3."""
    w1, b1, w2, b2, w3, b3 = params
    h1 = jnp.maximum(jnp.dot(x, w1, preferred_element_type=jnp.float32) + b1, 0.0)
    h2 = jnp.dot(h1.astype(jnp.bfloat16), w2.astype(jnp.bfloat16),
                 preferred_element_type=jnp.float32)
    h2 = jnp.maximum(h2 + b2, 0.0)
    return jnp.sum(h2 * w3.reshape(1, -1), axis=-1, keepdims=True) + b3.reshape(1, 1)


def reference_forward_f32(x, params):
    w1, b1, w2, b2, w3, b3 = params
    h1 = jnp.maximum(x @ w1 + b1, 0.0)
    h2 = jnp.maximum(h1 @ w2 + b2, 0.0)
    return h2 @ w3 + b3


# --------------------------------------------------------------------------- #
# Self-test
# --------------------------------------------------------------------------- #
if __name__ == "__main__":
    key = jax.random.PRNGKey(0)
    k_param, k_x1, k_x2 = jax.random.split(key, 3)

    n_state = 8
    raw_params = init_params(k_param, n_state)
    params = prepare_params(raw_params)   # prepared once, reused per call

    # --- test 1: small batch (single grid step, lane-dense 128-row tile) -----
    batch = 8
    x = jax.random.normal(k_x1, (batch, n_state), jnp.float32)
    out = jax.block_until_ready(value_net_forward(x, params))
    assert out.shape == (batch, 1), out.shape
    ref_mixed = reference_forward_mixed(x, raw_params)
    ref_f32 = reference_forward_f32(x, raw_params)
    assert jnp.allclose(out, ref_mixed, atol=2e-3, rtol=2e-3), \
        "mismatch vs mixed-precision reference"
    assert jnp.allclose(out, ref_f32, atol=1e-1, rtol=1e-1), \
        "mismatch vs f32 reference"

    # --- test 2: multi-tile path (2 tiles of 256, batch padding) -------------
    batch2 = 300
    x2 = jax.random.normal(k_x2, (batch2, n_state), jnp.float32)
    out2 = jax.block_until_ready(value_net_forward(x2, params, tile_b=256))
    assert out2.shape == (batch2, 1), out2.shape
    ref2 = reference_forward_mixed(x2, raw_params)
    assert jnp.allclose(out2, ref2, atol=2e-3, rtol=2e-3), \
        "mismatch vs mixed-precision reference (tiled)"

    print("KERNEL_OK")
</pallas_src>

<mosaic_0001>
module attributes {stable_mosaic.version = 11 : i64} {
  func.func @_value_net_kernel(%arg0: i32, %arg1: memref<128x8xf32, #tpu.memory_space<vmem>>, %arg2: memref<8x256xf32, #tpu.memory_space<vmem>>, %arg3: memref<1x256xf32, #tpu.memory_space<vmem>>, %arg4: memref<256x256xbf16, #tpu.memory_space<vmem>>, %arg5: memref<1x256xf32, #tpu.memory_space<vmem>>, %arg6: memref<1x256xf32, #tpu.memory_space<vmem>>, %arg7: memref<1x1xf32, #tpu.memory_space<vmem>>, %arg8: memref<1x128xf32, #tpu.memory_space<vmem>>) attributes {dimension_semantics = [#tpu.dimension_semantics<parallel>], iteration_bounds = array<i64: 1>, scalar_prefetch = 0 : i64, scratch_operands = 0 : i64, tpu.core_type = #tpu.core_type<tc>, window_params = [{transform_indices = @transform_0, window_bounds = array<i64: 128, 8>}, {pipeline_mode = #tpu.pipeline_mode<synchronous>, transform_indices = @transform_1, window_bounds = array<i64: 8, 256>}, {pipeline_mode = #tpu.pipeline_mode<synchronous>, transform_indices = @transform_2, window_bounds = array<i64: 1, 256>}, {pipeline_mode = #tpu.pipeline_mode<synchronous>, transform_indices = @transform_3, window_bounds = array<i64: 256, 256>}, {pipeline_mode = #tpu.pipeline_mode<synchronous>, transform_indices = @transform_4, window_bounds = array<i64: 1, 256>}, {pipeline_mode = #tpu.pipeline_mode<synchronous>, transform_indices = @transform_5, window_bounds = array<i64: 1, 256>}, {pipeline_mode = #tpu.pipeline_mode<synchronous>, transform_indices = @transform_6, window_bounds = array<i64: 1, 1>}, {transform_indices = @transform_7, window_bounds = array<i64: 1, 128>}]} {
    %c0 = arith.constant 0 : index
    %c0_0 = arith.constant 0 : index
    %0 = vector.load %arg1[%c0, %c0_0] : memref<128x8xf32, #tpu.memory_space<vmem>>, vector<128x8xf32>
    %c0_1 = arith.constant 0 : index
    %c0_2 = arith.constant 0 : index
    %1 = vector.load %arg2[%c0_1, %c0_2] : memref<8x256xf32, #tpu.memory_space<vmem>>, vector<8x256xf32>
    %cst = arith.constant dense<0.000000e+00> : vector<128x256xf32>
    %2 = tpu.matmul %0, %1, %cst {dimension_numbers = #tpu.dot_dimension_numbers<[1], [0], [0], [1], [0, 0, 1, 1], [], []>} : vector<128x8xf32>, vector<8x256xf32>, vector<128x256xf32> -> vector<128x256xf32>
    %c0_3 = arith.constant 0 : index
    %c0_4 = arith.constant 0 : index
    %3 = vector.load %arg3[%c0_3, %c0_4] : memref<1x256xf32, #tpu.memory_space<vmem>>, vector<1x256xf32>
    %4 = vector.broadcast %3 : vector<1x256xf32> to vector<128x256xf32>
    %5 = arith.addf %2, %4 : vector<128x256xf32>
    %cst_5 = arith.constant 0.000000e+00 : f32
    %6 = vector.broadcast %cst_5 : f32 to vector<128x256xf32>
    %7 = arith.maximumf %5, %6 : vector<128x256xf32>
    %8 = arith.truncf %7 : vector<128x256xf32> to vector<128x256xbf16>
    %c0_6 = arith.constant 0 : index
    %c0_7 = arith.constant 0 : index
    %9 = vector.load %arg4[%c0_6, %c0_7] : memref<256x256xbf16, #tpu.memory_space<vmem>>, vector<256x256xbf16>
    %cst_8 = arith.constant dense<0.000000e+00> : vector<128x256xf32>
    %10 = tpu.matmul %8, %9, %cst_8 {dimension_numbers = #tpu.dot_dimension_numbers<[1], [0], [0], [1], [0, 0, 1, 1], [], []>} : vector<128x256xbf16>, vector<256x256xbf16>, vector<128x256xf32> -> vector<128x256xf32>
    %c0_9 = arith.constant 0 : index
    %c0_10 = arith.constant 0 : index
    %11 = vector.load %arg5[%c0_9, %c0_10] : memref<1x256xf32, #tpu.memory_space<vmem>>, vector<1x256xf32>
    %12 = vector.broadcast %11 : vector<1x256xf32> to vector<128x256xf32>
    %13 = arith.addf %10, %12 : vector<128x256xf32>
    %cst_11 = arith.constant 0.000000e+00 : f32
    %14 = vector.broadcast %cst_11 : f32 to vector<128x256xf32>
    %15 = arith.maximumf %13, %14 : vector<128x256xf32>
    %c0_12 = arith.constant 0 : index
    %c0_13 = arith.constant 0 : index
    %16 = vector.load %arg6[%c0_12, %c0_13] : memref<1x256xf32, #tpu.memory_space<vmem>>, vector<1x256xf32>
    %17 = vector.broadcast %16 : vector<1x256xf32> to vector<128x256xf32>
    %18 = arith.mulf %15, %17 : vector<128x256xf32>
    %cst_14 = arith.constant dense<0.000000e+00> : vector<128xf32>
    %19 = vector.multi_reduction <add>, %18, %cst_14 [1] : vector<128x256xf32> to vector<128xf32>
    %20 = vector.shape_cast %19 : vector<128xf32> to vector<1x128xf32>
    %c0_15 = arith.constant 0 : index
    %c0_16 = arith.constant 0 : index
    %21 = vector.load %arg7[%c0_15, %c0_16] : memref<1x1xf32, #tpu.memory_space<vmem>>, vector<1x1xf32>
    %22 = vector.broadcast %21 : vector<1x1xf32> to vector<1x128xf32>
    %23 = arith.addf %20, %22 : vector<1x128xf32>
    %c0_17 = arith.constant 0 : index
    %c0_18 = arith.constant 0 : index
    %24 = vector.load %arg8[%c0_17, %c0_18] : memref<1x128xf32, #tpu.memory_space<vmem>>, vector<1x128xf32>
    tpu.vector_store %arg8[%c0_17, %c0_18], %23 {strides = array<i32>} : memref<1x128xf32, #tpu.memory_space<vmem>>, vector<1x128xf32>,
    return
  }
  func.func @transform_0(%arg0: i32) -> (i32, i32) {
    %c0_i32 = arith.constant 0 : i32
    %c0_i32_0 = arith.constant 0 : i32
    return %arg0, %c0_i32 : i32, i32
  }
  func.func @transform_1(%arg0: i32) -> (i32, i32) {
    %c0_i32 = arith.constant 0 : i32
    %c0_i32_0 = arith.constant 0 : i32
    %c0_i32_1 = arith.constant 0 : i32
    return %c0_i32, %c0_i32_0 : i32, i32
  }
  func.func @transform_2(%arg0: i32) -> (i32, i32) {
    %c0_i32 = arith.constant 0 : i32
    %c0_i32_0 = arith.constant 0 : i32
    %c0_i32_1 = arith.constant 0 : i32
    return %c0_i32, %c0_i32_0 : i32, i32
  }
  func.func @transform_3(%arg0: i32) -> (i32, i32) {
    %c0_i32 = arith.constant 0 : i32
    %c0_i32_0 = arith.constant 0 : i32
    %c0_i32_1 = arith.constant 0 : i32
    return %c0_i32, %c0_i32_0 : i32, i32
  }
  func.func @transform_4(%arg0: i32) -> (i32, i32) {
    %c0_i32 = arith.constant 0 : i32
    %c0_i32_0 = arith.constant 0 : i32
    %c0_i32_1 = arith.constant 0 : i32
    return %c0_i32, %c0_i32_0 : i32, i32
  }
  func.func @transform_5(%arg0: i32) -> (i32, i32) {
    %c0_i32 = arith.constant 0 : i32
    %c0_i32_0 = arith.constant 0 : i32
    %c0_i32_1 = arith.constant 0 : i32
    return %c0_i32, %c0_i32_0 : i32, i32
  }
  func.func @transform_6(%arg0: i32) -> (i32, i32) {
    %c0_i32 = arith.constant 0 : i32
    %c0_i32_0 = arith.constant 0 : i32
    %c0_i32_1 = arith.constant 0 : i32
    return %c0_i32, %c0_i32_0 : i32, i32
  }
  func.func @transform_7(%arg0: i32) -> (i32, i32) {
    %c0_i32 = arith.constant 0 : i32
    %c0_i32_0 = arith.constant 0 : i32
    return %c0_i32, %arg0 : i32, i32
  }
}

</mosaic_0001>

<llo_original>
// kernel: tpu_custom_call.1
$region0: #{tpu_custom_call.1}
  #allocation0 [shape = 'u32[]', space=smem, size = 0x4, offset = 0x4, fixed_abs, tag = 'smem constant byte address 0x4 - core index']
  #allocation1 [shape = 'u32[144,128]{1,0:T(1,128)}', space=vmem, size = 0x12000, scoped, tag = 'internal scratch']
  #allocation2 [shape = 'f32[1,1]{1,0:T(1,128)S(1)}', space=vmem, size = 0x200, scoped, tag = 'scoped memory for tpu_custom_call.1']
  %s0 = inlined_call_operand.vmem [shape: f32[128,8], index: 0, kind: input, shape index: {}]
  %s1 = inlined_call_operand.vmem [shape: f32[8,256], index: 1, kind: input, shape index: {}]
  %s2 = inlined_call_operand.vmem [shape: f32[1,256], index: 2, kind: input, shape index: {}]
  %s3 = inlined_call_operand.hbm [shape: bf16[256,256], index: 3, kind: input, shape index: {}]
  %s4 = inlined_call_operand.vmem [shape: f32[1,256], index: 4, kind: input, shape index: {}]
  %s5 = inlined_call_operand.vmem [shape: f32[1,256], index: 5, kind: input, shape index: {}]
  %s6 = inlined_call_operand.<no memory space> [shape: f32[1,1], index: 6, kind: input, shape index: {}]
  %s7 = inlined_call_operand.hbm [shape: f32[1,128], index: 7, kind: output, shape index: {}]
  %s8 = sld [smem:[#allocation0]]
  $region42: #{tpu_custom_call.1} parent=0
    _
  %s10 = ssub.s32 1, %s8
  %s11 = scalar_select 0, %s10, %s8
  %v12 = vstv %s6
  %13 = vst [vmem:[#allocation2] sm:$0x1] %v12
  $region1: #{tpu_custom_call.1} parent=0
    #allocation3 [shape = 'u8[131072]{0}', space=vmem, size = 0x20000, scoped, tag = 'input window, operand 3, single buffered']
    #allocation4 [shape = 's32[1]{0}', space=sflag, size = 0x4, scoped, tag = 'scoped memory for tpu_custom_call.1']
    #allocation5 [shape = 's32[1]{0}', space=sflag, size = 0x4, scoped, tag = 'scoped memory for tpu_custom_call.1']
    #allocation6 [shape = 'u8[512]{0}', space=vmem, size = 0x400, scoped, tag = 'output window, operand 0, single buffered']
    %14 = vsyncpa [#allocation4], 0
    %15 = vsyncpa [#allocation5], 0
    // Predicated region
    $region2: #{tpu_custom_call.1} parent=1 // pred_check
      _
    $region3: #{tpu_custom_call.1} parent=1 // pred_check_branch
      %17 = sbr.rel (0) target = $region5
    $region4: #{tpu_custom_call.1} parent=1 // pred_region
      _
    $region5: #{tpu_custom_call.1} parent=1 // pred_fallthru
      _
    // Predicated region
    $region6: #{tpu_custom_call.1} parent=1 // pred_check
      _
    $region7: #{tpu_custom_call.1} parent=1 // pred_check_branch
      %19 = sbr.rel (0) target = $region9
    $region8: #{tpu_custom_call.1} parent=1 // pred_region
      _
    $region9: #{tpu_custom_call.1} parent=1 // pred_fallthru
      _
    // Predicated region
    $region10: #{tpu_custom_call.1} parent=1 // pred_check
      _
    $region11: #{tpu_custom_call.1} parent=1 // pred_check_branch
      %21 = sbr.rel (0) target = $region13
    $region12: #{tpu_custom_call.1} parent=1 // pred_region
      _
    $region13: #{tpu_custom_call.1} parent=1 // pred_fallthru
      _
    // Predicated region
    $region14: #{tpu_custom_call.1} parent=1 // pred_check
      _
    $region15: #{tpu_custom_call.1} parent=1 // pred_check_branch
      %23 = sbr.rel (0) target = $region17
    $region16: #{tpu_custom_call.1} parent=1 // pred_region
      %s25 = ssub.s32 4096, 4096
      %26 = vsyncadd [#allocation4], %s25
      %s27 = sshll.u32 [#allocation3], 4
      %s28 = int_to_ptr.vmem [resolvable:$true] %s27
      %33 = dma.hbm_to_vmem [thread:$0]  %s3, 4096, %s28, [#allocation4], 128, 128, 8
    $region17: #{tpu_custom_call.1} parent=1 // pred_fallthru
      _
    // Predicated region
    $region18: #{tpu_custom_call.1} parent=1 // pred_check
      _
    $region19: #{tpu_custom_call.1} parent=1 // pred_check_branch
      %35 = sbr.rel (0) target = $region21
    $region20: #{tpu_custom_call.1} parent=1 // pred_region
      _
    $region21: #{tpu_custom_call.1} parent=1 // pred_fallthru
      _
    // Predicated region
    $region22: #{tpu_custom_call.1} parent=1 // pred_check
      _
    $region23: #{tpu_custom_call.1} parent=1 // pred_check_branch
      %37 = sbr.rel (0) target = $region25
    $region24: #{tpu_custom_call.1} parent=1 // pred_region
      _
    $region25: #{tpu_custom_call.1} parent=1 // pred_fallthru
      _
    // Predicated region
    $region26: #{tpu_custom_call.1} parent=1 // pred_check
      _
    $region27: #{tpu_custom_call.1} parent=1 // pred_check_branch
      %39 = sbr.rel (0) target = $region29
    $region28: #{tpu_custom_call.1} parent=1 // pred_region
      _
    $region29: #{tpu_custom_call.1} parent=1 // pred_fallthru
      _
    // Predicated region
    $region30: #{tpu_custom_call.1} parent=1 // pred_check
      _
    $region31: #{tpu_custom_call.1} parent=1 // pred_check_branch
      %41 = sbr.rel (0) target = $region33
    $region32: #{tpu_custom_call.1} parent=1 // pred_region
      %42 = dma.done [#allocation4], 4096
    $region33: #{tpu_custom_call.1} parent=1 // pred_fallthru
      _
    %v43 = vld [vmem:[%s0] sm:$0xff]
    %v44 = vld [vmem:[%s0 + $0x8] sm:$0xff]
    %v45 = vld [vmem:[%s0 + $0x10] sm:$0xff]
    %v46 = vld [vmem:[%s0 + $0x18] sm:$0xff]
    %v47 = vld [vmem:[%s0 + $0x20] sm:$0xff]
    %v48 = vld [vmem:[%s0 + $0x28] sm:$0xff]
    %v49 = vld [vmem:[%s0 + $0x30] sm:$0xff]
    %v50 = vld [vmem:[%s0 + $0x38] sm:$0xff]
    %v51 = vld [vmem:[%s0 + $0x40] sm:$0xff]
    %v52 = vld [vmem:[%s0 + $0x48] sm:$0xff]
    %v53 = vld [vmem:[%s0 + $0x50] sm:$0xff]
    %v54 = vld [vmem:[%s0 + $0x58] sm:$0xff]
    %v55 = vld [vmem:[%s0 + $0x60] sm:$0xff]
    %v56 = vld [vmem:[%s0 + $0x68] sm:$0xff]
    %v57 = vld [vmem:[%s0 + $0x70] sm:$0xff]
    %v58 = vld [vmem:[%s0 + $0x78] sm:$0xff]
    %v59 = vld [vmem:[%s1] sm:$0xff]
    %v60 = vld [vmem:[%s1 + $0x8] sm:$0xff]
    %v61 = vld [vmem:[%s2] sm:$0x3]
    %v63 = vlaneseq
    %v64 = vshrl.u32 %v63, 7
    %v65 = vsub.s32 0, %v64
    %v66 = vrot.slane %v61, %v65
    %v67 = vlaneseq
    %v68 = vshrl.u32 %v67, 7
    %v69 = vsub.s32 1, %v68
    %v70 = vrot.slane %v61, %v69
    %vm73 = vcmask 64512
    %v75 = vsel %vm73, %v43, 0
    %v78 = vsel %vm73, %v44, 0
    %v81 = vsel %vm73, %v45, 0
    %v84 = vsel %vm73, %v46, 0
    %v87 = vsel %vm73, %v47, 0
    %v90 = vsel %vm73, %v48, 0
    %v93 = vsel %vm73, %v49, 0
    %v96 = vsel %vm73, %v50, 0
    %v99 = vsel %vm73, %v51, 0
    %v102 = vsel %vm73, %v52, 0
    %v105 = vsel %vm73, %v53, 0
    %v108 = vsel %vm73, %v54, 0
    %v111 = vsel %vm73, %v55, 0
    %v114 = vsel %vm73, %v56, 0
    %v117 = vsel %vm73, %v57, 0
    %v120 = vsel %vm73, %v58, 0
    %122 = vmatprep.subr.mxu0 0.0
    %123 = vmatpush1.msra.mxu0 0.0
    %124 = vmatprep.subr.mxu0 0.0
    %125 = vmatpush1.msra.mxu0 0.0
    %126 = vmatprep.subr.mxu0 0.0
    %127 = vmatpush1.msra.mxu0 0.0
    %128 = vmatprep.subr.mxu0 0.0
    %129 = vmatpush1.msra.mxu0 0.0
    %130 = vmatprep.subr.mxu0 0.0
    %131 = vmatpush1.msra.mxu0 0.0
    %132 = vmatprep.subr.mxu0 0.0
    %133 = vmatpush1.msra.mxu0 0.0
    %134 = vmatprep.subr.mxu0 0.0
    %135 = vmatpush1.msra.mxu0 0.0
    %136 = vmatprep.subr.mxu0 0.0
    %137 = vmatpush1.msra.mxu0 0.0
    %138 = vmatprep.subr.mxu0 0.0
    %139 = vmatpush1.msra.mxu0 0.0
    %140 = vmatprep.subr.mxu0 0.0
    %141 = vmatpush1.msra.mxu0 0.0
    %142 = vmatprep.subr.mxu0 0.0
    %143 = vmatpush1.msra.mxu0 0.0
    %144 = vmatprep.subr.mxu0 0.0
    %145 = vmatpush1.msra.mxu0 0.0
    %146 = vmatprep.subr.mxu0 0.0
    %147 = vmatpush1.msra.mxu0 0.0
    %148 = vmatprep.subr.mxu0 0.0
    %149 = vmatpush1.msra.mxu0 0.0
    %150 = vmatprep.subr.mxu0 0.0
    %151 = vmatpush1.msra.mxu0 0.0
    %152 = vmatprep.subr.mxu0 %v60
    %153 = vmatpush1.msra.mxu0 %v59
    %154 = vmatprep.subr.mxu0 0.0
    %155 = vmatpush2.msra.mxu0 0.0
    %156 = vmatprep.subr.mxu0 0.0
    %157 = vmatpush2.msra.mxu0 0.0
    %158 = vmatprep.subr.mxu0 0.0
    %159 = vmatpush2.msra.mxu0 0.0
    %160 = vmatprep.subr.mxu0 0.0
    %161 = vmatpush2.msra.mxu0 0.0
    %162 = vmatprep.subr.mxu0 0.0
    %163 = vmatpush2.msra.mxu0 0.0
    %164 = vmatprep.subr.mxu0 0.0
    %165 = vmatpush2.msra.mxu0 0.0
    %166 = vmatprep.subr.mxu0 0.0
    %167 = vmatpush2.msra.mxu0 0.0
    %168 = vmatprep.subr.mxu0 0.0
    %169 = vmatpush2.msra.mxu0 0.0
    %170 = vmatprep.subr.mxu0 0.0
    %171 = vmatpush2.msra.mxu0 0.0
    %172 = vmatprep.subr.mxu0 0.0
    %173 = vmatpush2.msra.mxu0 0.0
    %174 = vmatprep.subr.mxu0 0.0
    %175 = vmatpush2.msra.mxu0 0.0
    %176 = vmatprep.subr.mxu0 0.0
    %177 = vmatpush2.msra.mxu0 0.0
    %178 = vmatprep.subr.mxu0 0.0
    %179 = vmatpush2.msra.mxu0 0.0
    %180 = vmatprep.subr.mxu0 0.0
    %181 = vmatpush2.msra.mxu0 0.0
    %182 = vmatprep.subr.mxu0 0.0
    %183 = vmatpush2.msra.mxu0 0.0
    %184 = vmatprep.subr.mxu0 0.0
    %185 = vmatpush2.msra.mxu0 0.0
    %186 = vmatprep.mubr.f32.mxu0 0.0
    %187 = vmatmul.mubr.f32.gmra.mxu0 %v75
    %v188 = vpop.f32.mrf.mxu0
    %v189 = vadd.f32 %v66, %v188
    %v190 = vpop.f32.mrf.mxu0
    %v191 = vadd.f32 %v70, %v190
    %192 = vmatprep.mubr.f32.mxu0 0.0
    %193 = vmatmul.mubr.f32.gmra.mxu0 %v78
    %v194 = vpop.f32.mrf.mxu0
    %v195 = vadd.f32 %v66, %v194
    %v196 = vpop.f32.mrf.mxu0
    %v197 = vadd.f32 %v70, %v196
    %198 = vmatprep.mubr.f32.mxu0 0.0
    %199 = vmatmul.mubr.f32.gmra.mxu0 %v81
    %v200 = vpop.f32.mrf.mxu0
    %v201 = vadd.f32 %v66, %v200
    %v202 = vpop.f32.mrf.mxu0
    %v203 = vadd.f32 %v70, %v202
    %204 = vmatprep.mubr.f32.mxu0 0.0
    %205 = vmatmul.mubr.f32.gmra.mxu0 %v84
    %v206 = vpop.f32.mrf.mxu0
    %v207 = vadd.f32 %v66, %v206
    %v208 = vpop.f32.mrf.mxu0
    %v209 = vadd.f32 %v70, %v208
    %210 = vmatprep.mubr.f32.mxu0 0.0
    %211 = vmatmul.mubr.f32.gmra.mxu0 %v87
    %v212 = vpop.f32.mrf.mxu0
    %v213 = vadd.f32 %v66, %v212
    %v214 = vpop.f32.mrf.mxu0
    %v215 = vadd.f32 %v70, %v214
    %216 = vmatprep.mubr.f32.mxu0 0.0
    %217 = vmatmul.mubr.f32.gmra.mxu0 %v90
    %v218 = vpop.f32.mrf.mxu0
    %v219 = vadd.f32 %v66, %v218
    %v220 = vpop.f32.mrf.mxu0
    %v221 = vadd.f32 %v70, %v220
    %222 = vmatprep.mubr.f32.mxu0 0.0
    %223 = vmatmul.mubr.f32.gmra.mxu0 %v93
    %v224 = vpop.f32.mrf.mxu0
    %v225 = vadd.f32 %v66, %v224
    %v226 = vpop.f32.mrf.mxu0
    %v227 = vadd.f32 %v70, %v226
    %228 = vmatprep.mubr.f32.mxu0 0.0
    %229 = vmatmul.mubr.f32.gmra.mxu0 %v96
    %v230 = vpop.f32.mrf.mxu0
    %v231 = vadd.f32 %v66, %v230
    %v232 = vpop.f32.mrf.mxu0
    %v233 = vadd.f32 %v70, %v232
    %234 = vmatprep.mubr.f32.mxu0 0.0
    %235 = vmatmul.mubr.f32.gmra.mxu0 %v99
    %v236 = vpop.f32.mrf.mxu0
    %v237 = vadd.f32 %v66, %v236
    %v238 = vpop.f32.mrf.mxu0
    %v239 = vadd.f32 %v70, %v238
    %240 = vmatprep.mubr.f32.mxu0 0.0
    %241 = vmatmul.mubr.f32.gmra.mxu0 %v102
    %v242 = vpop.f32.mrf.mxu0
    %v243 = vadd.f32 %v66, %v242
    %v244 = vpop.f32.mrf.mxu0
    %v245 = vadd.f32 %v70, %v244
    %246 = vmatprep.mubr.f32.mxu0 0.0
    %247 = vmatmul.mubr.f32.gmra.mxu0 %v105
    %v248 = vpop.f32.mrf.mxu0
    %v249 = vadd.f32 %v66, %v248
    %v250 = vpop.f32.mrf.mxu0
    %v251 = vadd.f32 %v70, %v250
    %252 = vmatprep.mubr.f32.mxu0 0.0
    %253 = vmatmul.mubr.f32.gmra.mxu0 %v108
    %v254 = vpop.f32.mrf.mxu0
    %v255 = vadd.f32 %v66, %v254
    %v256 = vpop.f32.mrf.mxu0
    %v257 = vadd.f32 %v70, %v256
    %258 = vmatprep.mubr.f32.mxu0 0.0
    %259 = vmatmul.mubr.f32.gmra.mxu0 %v111
    %v260 = vpop.f32.mrf.mxu0
    %v261 = vadd.f32 %v66, %v260
    %v262 = vpop.f32.mrf.mxu0
    %v263 = vadd.f32 %v70, %v262
    %264 = vmatprep.mubr.f32.mxu0 0.0
    %265 = vmatmul.mubr.f32.gmra.mxu0 %v114
    %v266 = vpop.f32.mrf.mxu0
    %v267 = vadd.f32 %v66, %v266
    %v268 = vpop.f32.mrf.mxu0
    %v269 = vadd.f32 %v70, %v268
    %270 = vmatprep.mubr.f32.mxu0 0.0
    %271 = vmatmul.mubr.f32.gmra.mxu0 %v117
    %v272 = vpop.f32.mrf.mxu0
    %v273 = vadd.f32 %v66, %v272
    %v274 = vpop.f32.mrf.mxu0
    %v275 = vadd.f32 %v70, %v274
    %276 = vmatprep.mubr.f32.mxu0 0.0
    %277 = vmatmul.mubr.f32.gmra.mxu0 %v120
    %v278 = vpop.f32.mrf.mxu0
    %v279 = vadd.f32 %v66, %v278
    %v280 = vpop.f32.mrf.mxu0
    %v281 = vadd.f32 %v70, %v280
    %282 = vdwg.mxu0
    %v283 = vmax.f32 %v189, 0.0
    %v284 = vmax.f32 %v191, 0.0
    %v285 = vmax.f32 %v195, 0.0
    %v286 = vmax.f32 %v197, 0.0
    %v287 = vmax.f32 %v201, 0.0
    %v288 = vmax.f32 %v203, 0.0
    %v289 = vmax.f32 %v207, 0.0
    %v290 = vmax.f32 %v209, 0.0
    %v291 = vmax.f32 %v213, 0.0
    %v292 = vmax.f32 %v215, 0.0
    %v293 = vmax.f32 %v219, 0.0
    %v294 = vmax.f32 %v221, 0.0
    %v295 = vmax.f32 %v225, 0.0
    %v296 = vmax.f32 %v227, 0.0
    %v297 = vmax.f32 %v231, 0.0
    %v298 = vmax.f32 %v233, 0.0
    %v299 = vmax.f32 %v237, 0.0
    %v300 = vmax.f32 %v239, 0.0
    %v301 = vmax.f32 %v243, 0.0
    %v302 = vmax.f32 %v245, 0.0
    %v303 = vmax.f32 %v249, 0.0
    %v304 = vmax.f32 %v251, 0.0
    %v305 = vmax.f32 %v255, 0.0
    %v306 = vmax.f32 %v257, 0.0
    %v307 = vmax.f32 %v261, 0.0
    %v308 = vmax.f32 %v263, 0.0
    %v309 = vmax.f32 %v267, 0.0
    %v310 = vmax.f32 %v269, 0.0
    %v311 = vmax.f32 %v273, 0.0
    %v312 = vmax.f32 %v275, 0.0
    %v313 = vmax.f32 %v279, 0.0
    %v314 = vmax.f32 %v281, 0.0
    %v315 = vpack.c.bf16 %v285, %v283
    %v316 = vpack.c.bf16 %v286, %v284
    %v317 = vpack.c.bf16 %v289, %v287
    %v318 = vpack.c.bf16 %v290, %v288
    %v319 = vpack.c.bf16 %v293, %v291
    %v320 = vpack.c.bf16 %v294, %v292
    %v321 = vpack.c.bf16 %v297, %v295
    %v322 = vpack.c.bf16 %v298, %v296
    %v323 = vpack.c.bf16 %v301, %v299
    %v324 = vpack.c.bf16 %v302, %v300
    %v325 = vpack.c.bf16 %v305, %v303
    %v326 = vpack.c.bf16 %v306, %v304
    %v327 = vpack.c.bf16 %v309, %v307
    %v328 = vpack.c.bf16 %v310, %v308
    %v329 = vpack.c.bf16 %v313, %v311
    %v330 = vpack.c.bf16 %v314, %v312
    %v331 = vld [vmem:[#allocation3] sm:$0xff]
    %v332 = vld [vmem:[#allocation3 + $0x8] sm:$0xff]
    %v333 = vld [vmem:[#allocation3 + $0x10] sm:$0xff]
    %v334 = vld [vmem:[#allocation3 + $0x18] sm:$0xff]
    %v335 = vld [vmem:[#allocation3 + $0x20] sm:$0xff]
    %v336 = vld [vmem:[#allocation3 + $0x28] sm:$0xff]
    %v337 = vld [vmem:[#allocation3 + $0x30] sm:$0xff]
    %v338 = vld [vmem:[#allocation3 + $0x38] sm:$0xff]
    %v339 = vld [vmem:[#allocation3 + $0x40] sm:$0xff]
    %v340 = vld [vmem:[#allocation3 + $0x48] sm:$0xff]
    %v341 = vld [vmem:[#allocation3 + $0x50] sm:$0xff]
    %v342 = vld [vmem:[#allocation3 + $0x58] sm:$0xff]
    %v343 = vld [vmem:[#allocation3 + $0x60] sm:$0xff]
    %v344 = vld [vmem:[#allocation3 + $0x68] sm:$0xff]
    %v345 = vld [vmem:[#allocation3 + $0x70] sm:$0xff]
    %v346 = vld [vmem:[#allocation3 + $0x78] sm:$0xff]
    %v347 = vld [vmem:[#allocation3 + $0x80] sm:$0xff]
    %v348 = vld [vmem:[#allocation3 + $0x88] sm:$0xff]
    %v349 = vld [vmem:[#allocation3 + $0x90] sm:$0xff]
    %v350 = vld [vmem:[#allocation3 + $0x98] sm:$0xff]
    %v351 = vld [vmem:[#allocation3 + $0xa0] sm:$0xff]
    %v352 = vld [vmem:[#allocation3 + $0xa8] sm:$0xff]
    %v353 = vld [vmem:[#allocation3 + $0xb0] sm:$0xff]
    %v354 = vld [vmem:[#allocation3 + $0xb8] sm:$0xff]
    %v355 = vld [vmem:[#allocation3 + $0xc0] sm:$0xff]
    %v356 = vld [vmem:[#allocation3 + $0xc8] sm:$0xff]
    %v357 = vld [vmem:[#allocation3 + $0xd0] sm:$0xff]
    %v358 = vld [vmem:[#allocation3 + $0xd8] sm:$0xff]
    %v359 = vld [vmem:[#allocation3 + $0xe0] sm:$0xff]
    %v360 = vld [vmem:[#allocation3 + $0xe8] sm:$0xff]
    %v361 = vld [vmem:[#allocation3 + $0xf0] sm:$0xff]
    %v362 = vld [vmem:[#allocation3 + $0xf8] sm:$0xff]
    %v363 = vld [vmem:[%s4] sm:$0x3]
    %v365 = vlaneseq
    %v366 = vshrl.u32 %v365, 7
    %v367 = vsub.s32 0, %v366
    %v368 = vrot.slane %v363, %v367
    %v369 = vlaneseq
    %v370 = vshrl.u32 %v369, 7
    %v371 = vsub.s32 1, %v370
    %v372 = vrot.slane %v363, %v371
    %v407 = vunpack.c.l.b16 %v331
    %v408 = vunpack.c.h.b16 %v331
    %v409 = vunpack.c.l.b16 %v332
    %v410 = vunpack.c.h.b16 %v332
    %v411 = vunpack.c.l.b16 %v333
    %v412 = vunpack.c.h.b16 %v333
    %v413 = vunpack.c.l.b16 %v334
    %v414 = vunpack.c.h.b16 %v334
    %v415 = vunpack.c.l.b16 %v335
    %v416 = vunpack.c.h.b16 %v335
    %v417 = vunpack.c.l.b16 %v336
    %v418 = vunpack.c.h.b16 %v336
    %v419 = vunpack.c.l.b16 %v337
    %v420 = vunpack.c.h.b16 %v337
    %v421 = vunpack.c.l.b16 %v338
    %v422 = vunpack.c.h.b16 %v338
    %v423 = vunpack.c.l.b16 %v339
    %v424 = vunpack.c.h.b16 %v339
    %v425 = vunpack.c.l.b16 %v340
    %v426 = vunpack.c.h.b16 %v340
    %v427 = vunpack.c.l.b16 %v341
    %v428 = vunpack.c.h.b16 %v341
    %v429 = vunpack.c.l.b16 %v342
    %v430 = vunpack.c.h.b16 %v342
    %v431 = vunpack.c.l.b16 %v343
    %v432 = vunpack.c.h.b16 %v343
    %v433 = vunpack.c.l.b16 %v344
    %v434 = vunpack.c.h.b16 %v344
    %v435 = vunpack.c.l.b16 %v345
    %v436 = vunpack.c.h.b16 %v345
    %v437 = vunpack.c.l.b16 %v346
    %v438 = vunpack.c.h.b16 %v346
    %v439 = vunpack.c.l.b16 %v347
    %v440 = vunpack.c.h.b16 %v347
    %v441 = vunpack.c.l.b16 %v348
    %v442 = vunpack.c.h.b16 %v348
    %v443 = vunpack.c.l.b16 %v349
    %v444 = vunpack.c.h.b16 %v349
    %v445 = vunpack.c.l.b16 %v350
    %v446 = vunpack.c.h.b16 %v350
    %v447 = vunpack.c.l.b16 %v351
    %v448 = vunpack.c.h.b16 %v351
    %v449 = vunpack.c.l.b16 %v352
    %v450 = vunpack.c.h.b16 %v352
    %v451 = vunpack.c.l.b16 %v353
    %v452 = vunpack.c.h.b16 %v353
    %v453 = vunpack.c.l.b16 %v354
    %v454 = vunpack.c.h.b16 %v354
    %v455 = vunpack.c.l.b16 %v355
    %v456 = vunpack.c.h.b16 %v355
    %v457 = vunpack.c.l.b16 %v356
    %v458 = vunpack.c.h.b16 %v356
    %v459 = vunpack.c.l.b16 %v357
    %v460 = vunpack.c.h.b16 %v357
    %v461 = vunpack.c.l.b16 %v358
    %v462 = vunpack.c.h.b16 %v358
    %v463 = vunpack.c.l.b16 %v359
    %v464 = vunpack.c.h.b16 %v359
    %v465 = vunpack.c.l.b16 %v360
    %v466 = vunpack.c.h.b16 %v360
    %v467 = vunpack.c.l.b16 %v361
    %v468 = vunpack.c.h.b16 %v361
    %v469 = vunpack.c.l.b16 %v362
    %v470 = vunpack.c.h.b16 %v362
    %v471 = vpack.c.b16 %v409, %v407
    %v472 = vpack.c.b16 %v410, %v408
    %v473 = vpack.c.b16 %v413, %v411
    %v474 = vpack.c.b16 %v414, %v412
    %v475 = vpack.c.b16 %v417, %v415
    %v476 = vpack.c.b16 %v418, %v416
    %v477 = vpack.c.b16 %v421, %v419
    %v478 = vpack.c.b16 %v422, %v420
    %v479 = vpack.c.b16 %v425, %v423
    %v480 = vpack.c.b16 %v426, %v424
    %v481 = vpack.c.b16 %v429, %v427
    %v482 = vpack.c.b16 %v430, %v428
    %v483 = vpack.c.b16 %v433, %v431
    %v484 = vpack.c.b16 %v434, %v432
    %v485 = vpack.c.b16 %v437, %v435
    %v486 = vpack.c.b16 %v438, %v436
    %v487 = vpack.c.b16 %v441, %v439
    %v488 = vpack.c.b16 %v442, %v440
    %v489 = vpack.c.b16 %v445, %v443
    %v490 = vpack.c.b16 %v446, %v444
    %v491 = vpack.c.b16 %v449, %v447
    %v492 = vpack.c.b16 %v450, %v448
    %v493 = vpack.c.b16 %v453, %v451
    %v494 = vpack.c.b16 %v454, %v452
    %v495 = vpack.c.b16 %v457, %v455
    %v496 = vpack.c.b16 %v458, %v456
    %v497 = vpack.c.b16 %v461, %v459
    %v498 = vpack.c.b16 %v462, %v460
    %v499 = vpack.c.b16 %v465, %v463
    %v500 = vpack.c.b16 %v466, %v464
    %v501 = vpack.c.b16 %v469, %v467
    %v502 = vpack.c.b16 %v470, %v468
    %535 = vmatprep.subr.bf16.mxu0 %v486
    %536 = vmatpush1.bf16.msra.mxu0 %v485
    %537 = vmatprep.subr.bf16.mxu0 %v484
    %538 = vmatpush1.bf16.msra.mxu0 %v483
    %539 = vmatprep.subr.bf16.mxu0 %v482
    %540 = vmatpush1.bf16.msra.mxu0 %v481
    %541 = vmatprep.subr.bf16.mxu0 %v480
    %542 = vmatpush1.bf16.msra.mxu0 %v479
    %543 = vmatprep.subr.bf16.mxu0 %v478
    %544 = vmatpush1.bf16.msra.mxu0 %v477
    %545 = vmatprep.subr.bf16.mxu0 %v476
    %546 = vmatpush1.bf16.msra.mxu0 %v475
    %547 = vmatprep.subr.bf16.mxu0 %v474
    %548 = vmatpush1.bf16.msra.mxu0 %v473
    %549 = vmatprep.subr.bf16.mxu0 %v472
    %550 = vmatpush1.bf16.msra.mxu0 %v471
    %551 = vmatprep.subr.bf16.mxu0 %v502
    %552 = vmatpush2.bf16.msra.mxu0 %v501
    %553 = vmatprep.subr.bf16.mxu0 %v500
    %554 = vmatpush2.bf16.msra.mxu0 %v499
    %555 = vmatprep.subr.bf16.mxu0 %v498
    %556 = vmatpush2.bf16.msra.mxu0 %v497
    %557 = vmatprep.subr.bf16.mxu0 %v496
    %558 = vmatpush2.bf16.msra.mxu0 %v495
    %559 = vmatprep.subr.bf16.mxu0 %v494
    %560 = vmatpush2.bf16.msra.mxu0 %v493
    %561 = vmatprep.subr.bf16.mxu0 %v492
    %562 = vmatpush2.bf16.msra.mxu0 %v491
    %563 = vmatprep.subr.bf16.mxu0 %v490
    %564 = vmatpush2.bf16.msra.mxu0 %v489
    %565 = vmatprep.subr.bf16.mxu0 %v488
    %566 = vmatpush2.bf16.msra.mxu0 %v487
    %567 = vmatprep.mubr.bf16.mxu0 %v316
    %568 = vmatmul.mubr.bf16.gmra.mxu0 %v315
    %v569 = vpop.f32.mrf.mxu0
    %v570 = vadd.f32 %v368, %v569
    %v571 = vpop.f32.mrf.mxu0
    %v572 = vadd.f32 %v372, %v571
    %v573 = vpop.f32.mrf.mxu0
    %v574 = vadd.f32 %v368, %v573
    %v575 = vpop.f32.mrf.mxu0
    %v576 = vadd.f32 %v372, %v575
    %577 = vmatprep.mubr.bf16.mxu0 %v318
    %578 = vmatmul.mubr.bf16.gmra.mxu0 %v317
    %v579 = vpop.f32.mrf.mxu0
    %v580 = vadd.f32 %v368, %v579
    %v581 = vpop.f32.mrf.mxu0
    %v582 = vadd.f32 %v372, %v581
    %v583 = vpop.f32.mrf.mxu0
    %v584 = vadd.f32 %v368, %v583
    %v585 = vpop.f32.mrf.mxu0
    %v586 = vadd.f32 %v372, %v585
    %587 = vmatprep.mubr.bf16.mxu0 %v320
    %588 = vmatmul.mubr.bf16.gmra.mxu0 %v319
    %v589 = vpop.f32.mrf.mxu0
    %v590 = vadd.f32 %v368, %v589
    %v591 = vpop.f32.mrf.mxu0
    %v592 = vadd.f32 %v372, %v591
    %v593 = vpop.f32.mrf.mxu0
    %v594 = vadd.f32 %v368, %v593
    %v595 = vpop.f32.mrf.mxu0
    %v596 = vadd.f32 %v372, %v595
    %597 = vmatprep.mubr.bf16.mxu0 %v322
    %598 = vmatmul.mubr.bf16.gmra.mxu0 %v321
    %v599 = vpop.f32.mrf.mxu0
    %v600 = vadd.f32 %v368, %v599
    %v601 = vpop.f32.mrf.mxu0
    %v602 = vadd.f32 %v372, %v601
    %v603 = vpop.f32.mrf.mxu0
    %v604 = vadd.f32 %v368, %v603
    %v605 = vpop.f32.mrf.mxu0
    %v606 = vadd.f32 %v372, %v605
    %607 = vmatprep.mubr.bf16.mxu0 %v324
    %608 = vmatmul.mubr.bf16.gmra.mxu0 %v323
    %v609 = vpop.f32.mrf.mxu0
    %v610 = vadd.f32 %v368, %v609
    %v611 = vpop.f32.mrf.mxu0
    %v612 = vadd.f32 %v372, %v611
    %v613 = vpop.f32.mrf.mxu0
    %v614 = vadd.f32 %v368, %v613
    %v615 = vpop.f32.mrf.mxu0
    %v616 = vadd.f32 %v372, %v615
    %617 = vmatprep.mubr.bf16.mxu0 %v326
    %618 = vmatmul.mubr.bf16.gmra.mxu0 %v325
    %v619 = vpop.f32.mrf.mxu0
    %v620 = vadd.f32 %v368, %v619
    %v621 = vpop.f32.mrf.mxu0
    %v622 = vadd.f32 %v372, %v621
    %v623 = vpop.f32.mrf.mxu0
    %v624 = vadd.f32 %v368, %v623
    %v625 = vpop.f32.mrf.mxu0
    %v626 = vadd.f32 %v372, %v625
    %627 = vmatprep.mubr.bf16.mxu0 %v328
    %628 = vmatmul.mubr.bf16.gmra.mxu0 %v327
    %v629 = vpop.f32.mrf.mxu0
    %v630 = vadd.f32 %v368, %v629
    %v631 = vpop.f32.mrf.mxu0
    %v632 = vadd.f32 %v372, %v631
    %v633 = vpop.f32.mrf.mxu0
    %v634 = vadd.f32 %v368, %v633
    %v635 = vpop.f32.mrf.mxu0
    %v636 = vadd.f32 %v372, %v635
    %637 = vmatprep.mubr.bf16.mxu0 %v330
    %638 = vmatmul.mubr.bf16.gmra.mxu0 %v329
    %v639 = vpop.f32.mrf.mxu0
    %v640 = vadd.f32 %v368, %v639
    %v641 = vpop.f32.mrf.mxu0
    %v642 = vadd.f32 %v372, %v641
    %v643 = vpop.f32.mrf.mxu0
    %v644 = vadd.f32 %v368, %v643
    %v645 = vpop.f32.mrf.mxu0
    %v646 = vadd.f32 %v372, %v645
    %647 = vdwg.mxu0
    %v648 = vmax.f32 %v570, 0.0
    %v649 = vmax.f32 %v572, 0.0
    %v650 = vmax.f32 %v574, 0.0
    %v651 = vmax.f32 %v576, 0.0
    %v652 = vmax.f32 %v580, 0.0
    %v653 = vmax.f32 %v582, 0.0
    %v654 = vmax.f32 %v584, 0.0
    %v655 = vmax.f32 %v586, 0.0
    %v656 = vmax.f32 %v590, 0.0
    %v657 = vmax.f32 %v592, 0.0
    %v658 = vmax.f32 %v594, 0.0
    %v659 = vmax.f32 %v596, 0.0
    %v660 = vmax.f32 %v600, 0.0
    %v661 = vmax.f32 %v602, 0.0
    %v662 = vmax.f32 %v604, 0.0
    %v663 = vmax.f32 %v606, 0.0
    %v664 = vmax.f32 %v610, 0.0
    %v665 = vmax.f32 %v612, 0.0
    %v666 = vmax.f32 %v614, 0.0
    %v667 = vmax.f32 %v616, 0.0
    %v668 = vmax.f32 %v620, 0.0
    %v669 = vmax.f32 %v622, 0.0
    %v670 = vmax.f32 %v624, 0.0
    %v671 = vmax.f32 %v626, 0.0
    %v672 = vmax.f32 %v630, 0.0
    %v673 = vmax.f32 %v632, 0.0
    %v674 = vmax.f32 %v634, 0.0
    %v675 = vmax.f32 %v636, 0.0
    %v676 = vmax.f32 %v640, 0.0
    %v677 = vmax.f32 %v642, 0.0
    %v678 = vmax.f32 %v644, 0.0
    %v679 = vmax.f32 %v646, 0.0
    %v680 = vld [vmem:[%s5] sm:$0x3]
    %v682 = vlaneseq
    %v683 = vshrl.u32 %v682, 7
    %v684 = vsub.s32 0, %v683
    %v685 = vrot.slane %v680, %v684
    %v686 = vlaneseq
    %v687 = vshrl.u32 %v686, 7
    %v688 = vsub.s32 1, %v687
    %v689 = vrot.slane %v680, %v688
    %v692 = vmul.f32 %v648, %v685
    %v693 = vmul.f32 %v649, %v689
    %v694 = vmul.f32 %v650, %v685
    %v695 = vmul.f32 %v651, %v689
    %v696 = vmul.f32 %v652, %v685
    %v697 = vmul.f32 %v653, %v689
    %v698 = vmul.f32 %v654, %v685
    %v699 = vmul.f32 %v655, %v689
    %v700 = vmul.f32 %v656, %v685
    %v701 = vmul.f32 %v657, %v689
    %v702 = vmul.f32 %v658, %v685
    %v703 = vmul.f32 %v659, %v689
    %v704 = vmul.f32 %v660, %v685
    %v705 = vmul.f32 %v661, %v689
    %v706 = vmul.f32 %v662, %v685
    %v707 = vmul.f32 %v663, %v689
    %v708 = vmul.f32 %v664, %v685
    %v709 = vmul.f32 %v665, %v689
    %v710 = vmul.f32 %v666, %v685
    %v711 = vmul.f32 %v667, %v689
    %v712 = vmul.f32 %v668, %v685
    %v713 = vmul.f32 %v669, %v689
    %v714 = vmul.f32 %v670, %v685
    %v715 = vmul.f32 %v671, %v689
    %v716 = vmul.f32 %v672, %v685
    %v717 = vmul.f32 %v673, %v689
    %v718 = vmul.f32 %v674, %v685
    %v719 = vmul.f32 %v675, %v689
    %v720 = vmul.f32 %v676, %v685
    %v721 = vmul.f32 %v677, %v689
    %v722 = vmul.f32 %v678, %v685
    %v723 = vmul.f32 %v679, %v689
    %v724 = vadd.f32 %v692, %v693
    %725 = vadd.xlane.f32.xlu0 %v724
    %v726 = vpop.xlane.xlu0 %725
    %v727 = vadd.f32 %v694, %v695
    %728 = vadd.xlane.f32.xlu0 %v727
    %v729 = vpop.xlane.xlu0 %728
    %v730 = vadd.f32 %v696, %v697
    %731 = vadd.xlane.f32.xlu0 %v730
    %v732 = vpop.xlane.xlu0 %731
    %v733 = vadd.f32 %v698, %v699
    %734 = vadd.xlane.f32.xlu0 %v733
    %v735 = vpop.xlane.xlu0 %734
    %v736 = vadd.f32 %v700, %v701
    %737 = vadd.xlane.f32.xlu0 %v736
    %v738 = vpop.xlane.xlu0 %737
    %v739 = vadd.f32 %v702, %v703
    %740 = vadd.xlane.f32.xlu0 %v739
    %v741 = vpop.xlane.xlu0 %740
    %v742 = vadd.f32 %v704, %v705
    %743 = vadd.xlane.f32.xlu0 %v742
    %v744 = vpop.xlane.xlu0 %743
    %v745 = vadd.f32 %v706, %v707
    %746 = vadd.xlane.f32.xlu0 %v745
    %v747 = vpop.xlane.xlu0 %746
    %v748 = vadd.f32 %v708, %v709
    %749 = vadd.xlane.f32.xlu0 %v748
    %v750 = vpop.xlane.xlu0 %749
    %v751 = vadd.f32 %v710, %v711
    %752 = vadd.xlane.f32.xlu0 %v751
    %v753 = vpop.xlane.xlu0 %752
    %v754 = vadd.f32 %v712, %v713
    %755 = vadd.xlane.f32.xlu0 %v754
    %v756 = vpop.xlane.xlu0 %755
    %v757 = vadd.f32 %v714, %v715
    %758 = vadd.xlane.f32.xlu0 %v757
    %v759 = vpop.xlane.xlu0 %758
    %v760 = vadd.f32 %v716, %v717
    %761 = vadd.xlane.f32.xlu0 %v760
    %v762 = vpop.xlane.xlu0 %761
    %v763 = vadd.f32 %v718, %v719
    %764 = vadd.xlane.f32.xlu0 %v763
    %v765 = vpop.xlane.xlu0 %764
    %v766 = vadd.f32 %v720, %v721
    %767 = vadd.xlane.f32.xlu0 %v766
    %v768 = vpop.xlane.xlu0 %767
    %v769 = vadd.f32 %v722, %v723
    %770 = vadd.xlane.f32.xlu0 %v769
    %v771 = vpop.xlane.xlu0 %770
    %v772 = vld [vmem:[#allocation2] sm:$0x1]
    %774 = vset.pattern.permute.xlu0 0
    %775 = vperm.xlu0 %774, %v772
    %v776 = vpop.permute.xlu0 %775
    %v778 = vlaneseq
    %v779 = vshrl.u32 %v778, 7
    %v780 = vsub.s32 0, %v779
    %v781 = vrot.slane %v776, %v780
    %v782 = vadd.f32 %v726, %v781
    %v783 = vadd.f32 %v729, %v781
    %v784 = vadd.f32 %v732, %v781
    %v785 = vadd.f32 %v735, %v781
    %v786 = vadd.f32 %v738, %v781
    %v787 = vadd.f32 %v741, %v781
    %v788 = vadd.f32 %v744, %v781
    %v789 = vadd.f32 %v747, %v781
    %v790 = vadd.f32 %v750, %v781
    %v791 = vadd.f32 %v753, %v781
    %v792 = vadd.f32 %v756, %v781
    %v793 = vadd.f32 %v759, %v781
    %v794 = vadd.f32 %v762, %v781
    %v795 = vadd.f32 %v765, %v781
    %v796 = vadd.f32 %v768, %v781
    %v797 = vadd.f32 %v771, %v781
    %v814 = vlaneseq
    %v815 = vand.u32 %v814, 127
    %v816 = vlaneseq
    %v817 = vshrl.u32 %v816, 7
    %v818 = vsub.s32 %v815, %v817
    %v819 = vrot.slane %v782, %v818
    %v820 = vadd.s32 %v815, 4294967288
    %v821 = vlaneseq
    %v822 = vshrl.u32 %v821, 7
    %v823 = vsub.s32 %v820, %v822
    %v824 = vrot.slane %v783, %v823
    %vm825 = vcmask 130112
    %v826 = vsel %vm825, %v824, %v819
    %v827 = vadd.s32 %v815, 4294967280
    %v828 = vlaneseq
    %v829 = vshrl.u32 %v828, 7
    %v830 = vsub.s32 %v827, %v829
    %v831 = vrot.slane %v784, %v830
    %vm832 = vcmask 195712
    %v833 = vsel %vm832, %v831, %v826
    %v834 = vadd.s32 %v815, 4294967272
    %v835 = vlaneseq
    %v836 = vshrl.u32 %v835, 7
    %v837 = vsub.s32 %v834, %v836
    %v838 = vrot.slane %v785, %v837
    %vm839 = vcmask 261312
    %v840 = vsel %vm839, %v838, %v833
    %v841 = vadd.s32 %v815, 4294967264
    %v842 = vlaneseq
    %v843 = vshrl.u32 %v842, 7
    %v844 = vsub.s32 %v841, %v843
    %v845 = vrot.slane %v786, %v844
    %vm846 = vcmask 326912
    %v847 = vsel %vm846, %v845, %v840
    %v848 = vadd.s32 %v815, 4294967256
    %v849 = vlaneseq
    %v850 = vshrl.u32 %v849, 7
    %v851 = vsub.s32 %v848, %v850
    %v852 = vrot.slane %v787, %v851
    %vm853 = vcmask 392512
    %v854 = vsel %vm853, %v852, %v847
    %v855 = vadd.s32 %v815, 4294967248
    %v856 = vlaneseq
    %v857 = vshrl.u32 %v856, 7
    %v858 = vsub.s32 %v855, %v857
    %v859 = vrot.slane %v788, %v858
    %vm860 = vcmask 458112
    %v861 = vsel %vm860, %v859, %v854
    %v862 = vadd.s32 %v815, 4294967240
    %v863 = vlaneseq
    %v864 = vshrl.u32 %v863, 7
    %v865 = vsub.s32 %v862, %v864
    %v866 = vrot.slane %v789, %v865
    %vm867 = vcmask 523712
    %v868 = vsel %vm867, %v866, %v861
    %v869 = vadd.s32 %v815, 4294967232
    %v870 = vlaneseq
    %v871 = vshrl.u32 %v870, 7
    %v872 = vsub.s32 %v869, %v871
    %v873 = vrot.slane %v790, %v872
    %vm874 = vcmask 589312
    %v875 = vsel %vm874, %v873, %v868
    %v876 = vadd.s32 %v815, 4294967224
    %v877 = vlaneseq
    %v878 = vshrl.u32 %v877, 7
    %v879 = vsub.s32 %v876, %v878
    %v880 = vrot.slane %v791, %v879
    %vm881 = vcmask 654912
    %v882 = vsel %vm881, %v880, %v875
    %v883 = vadd.s32 %v815, 4294967216
    %v884 = vlaneseq
    %v885 = vshrl.u32 %v884, 7
    %v886 = vsub.s32 %v883, %v885
    %v887 = vrot.slane %v792, %v886
    %vm888 = vcmask 720512
    %v889 = vsel %vm888, %v887, %v882
    %v890 = vadd.s32 %v815, 4294967208
    %v891 = vlaneseq
    %v892 = vshrl.u32 %v891, 7
    %v893 = vsub.s32 %v890, %v892
    %v894 = vrot.slane %v793, %v893
    %vm895 = vcmask 786112
    %v896 = vsel %vm895, %v894, %v889
    %v897 = vadd.s32 %v815, 4294967200
    %v898 = vlaneseq
    %v899 = vshrl.u32 %v898, 7
    %v900 = vsub.s32 %v897, %v899
    %v901 = vrot.slane %v794, %v900
    %vm902 = vcmask 851712
    %v903 = vsel %vm902, %v901, %v896
    %v904 = vadd.s32 %v815, 4294967192
    %v905 = vlaneseq
    %v906 = vshrl.u32 %v905, 7
    %v907 = vsub.s32 %v904, %v906
    %v908 = vrot.slane %v795, %v907
    %vm909 = vcmask 917312
    %v910 = vsel %vm909, %v908, %v903
    %v911 = vadd.s32 %v815, 4294967184
    %v912 = vlaneseq
    %v913 = vshrl.u32 %v912, 7
    %v914 = vsub.s32 %v911, %v913
    %v915 = vrot.slane %v796, %v914
    %vm916 = vcmask 982912
    %v917 = vsel %vm916, %v915, %v910
    %v918 = vadd.s32 %v815, 4294967176
    %v919 = vlaneseq
    %v920 = vshrl.u32 %v919, 7
    %v921 = vsub.s32 %v918, %v920
    %v922 = vrot.slane %v797, %v921
    %vm923 = vcmask 1048512
    %v924 = vsel %vm923, %v922, %v917
    %926 = vst [vmem:[#allocation6] sm:$0x1] %v924
    // Predicated region
    $region34: #{tpu_custom_call.1} parent=1 // pred_check
      _
    $region35: #{tpu_custom_call.1} parent=1 // pred_check_branch
      %928 = sbr.rel (0) target = $region37
    $region36: #{tpu_custom_call.1} parent=1 // pred_region
      %s930 = ssub.s32 16, 16
      %931 = vsyncadd [#allocation5], %s930
      %s933 = sshll.u32 [#allocation6], 4
      %s934 = int_to_ptr.vmem [resolvable:$true] %s933
      %936 = dma.vmem_to_hbm [thread:$0]  %s934, 16, %s7, [#allocation5]
    $region37: #{tpu_custom_call.1} parent=1 // pred_fallthru
      _
    // Predicated region
    $region38: #{tpu_custom_call.1} parent=1 // pred_check
      _
    $region39: #{tpu_custom_call.1} parent=1 // pred_check_branch
      %938 = sbr.rel (0) target = $region41
    $region40: #{tpu_custom_call.1} parent=1 // pred_region
      %939 = dma.done [#allocation5], 16
    $region41: #{tpu_custom_call.1} parent=1 // pred_fallthru
      _
    %940 = vsyncpa [#allocation4], 1
    %941 = vsyncpa [#allocation5], 1

</llo_original>
